<compile_context>
chip_gen: v7x
topology: tpu7x:2x2x1
jax: 0.10.0
libtpu: 0.0.40
codegen_flags: <defaults>
</compile_context>

<pallas_src>
import numpy as np
import jax
import jax.numpy as jnp
from jax import lax
from jax.experimental import pallas as pl
from jax.experimental.pallas import tpu as pltpu


# ----------------------------------------------------------------------------- taps
def gaussian_taps(kernel_size: int, variance: float = 1.0):
    """scipy.signal.windows.gaussian(K, std=variance) (sym=True, unnormalized),
    as Python floats so they fold into trace-time constants."""
    n = np.arange(kernel_size, dtype=np.float64) - (kernel_size - 1) / 2.0
    g = np.exp(-0.5 * (n / float(variance)) ** 2)
    return tuple(float(v) for v in g)


def create_kernel(kernel_size: int, variance: float = 1.0) -> jnp.ndarray:
    """Deterministic re-implementation of the module's create_kernel: shape (1, K)."""
    return jnp.asarray(gaussian_taps(kernel_size, variance), jnp.float32)[None, :]


def _band_matrix(n: int, taps, lo: int, transposed: bool) -> np.ndarray:
    """Banded Toeplitz matrix for a 1-D 'same' zero-padded cross-correlation.

    transposed=False:  T[q, w] = g[q - w + lo]   (use as  x @ T : taps along lanes)
    transposed=True :  S[h, p] = g[p - h + lo]   (use as  S @ x : taps along sublanes)
    Out-of-range diagonals are dropped, which reproduces zero padding exactly.
    """
    K = len(taps)
    m = np.zeros((n, n), np.float64)
    for j in range(K):
        k = (j - lo) if transposed else (lo - j)
        if abs(k) < n:
            m += np.diag(np.full(n - abs(k), taps[j], np.float64), k=k)
    return m.astype(np.float32)


# ----------------------------------------------------------------------------- kernel
def _laser_filter_kernel(x_ref, th_ref, tw_ref, out_ref):
    """One batch block per grid step.

    x_ref  : (B_BLK, H, Wk)  input block  (VMEM, auto-pipelined)
    th_ref : (H, H)          vertical band matrix  S[h,p] = g[p-h+lo]  (resident)
    tw_ref : (Wk, Wk)        horizontal band matrix T[q,w] = g[q-w+lo] (resident)
    out_ref: (B_BLK, H, Wk)  output block
    """
    tw = tw_ref[...]                      # loaded once per step, reused by all images
    th = th_ref[...]
    nb = x_ref.shape[0]

    def one_image(b, carry=0):
        xb = x_ref[b].astype(jnp.float32)                                    # (H, Wk)
        mid = jnp.dot(xb, tw, preferred_element_type=jnp.float32)            # horizontal taps (MXU)
        yb = jnp.dot(th, mid, preferred_element_type=jnp.float32)            # vertical taps (MXU)
        out_ref[b] = yb.astype(out_ref.dtype)
        return carry

    if nb <= 8:
        # Short, fixed trip count: full unroll with static batch indices.
        for b in range(nb):
            one_image(b)
    else:
        # Large blocks: bounded live ranges instead of an unbounded Python unroll.
        lax.fori_loop(0, nb, one_image, 0)


# ----------------------------------------------------------------------------- sizing
def _vmem_capacity_bytes() -> int:
    try:
        return int(pltpu.get_tpu_info().vmem_capacity_bytes)
    except Exception:
        return 64 * 1024 * 1024          # conservative fallback (v7x per-TC size)


def _choose_batch_block(N, H, Wk, itemsize, vmem_cap):
    budget = int(vmem_cap * 0.55)                    # headroom for compiler internals
    fixed = 2 * 4 * (H * H + Wk * Wk)                # (double-buffered) band matrices
    per_b = 2 * 2 * H * Wk * itemsize                # double-buffered input+output blocks
    per_b += 2 * H * Wk * 4                          # f32 matmul intermediates
    blk = max(1, (budget - fixed) // max(per_b, 1))
    blk = min(blk, N)
    if N > 1:
        blk = min(blk, (N + 1) // 2)                 # >= 2 grid steps: feed both v7x cores
    return max(1, int(blk))


def _vmem_limit(need_bytes, vmem_cap):
    # Cap well below physical VMEM (e.g. ~48 MiB of a 64 MiB v7x TC), never at 100%.
    return int(min(int(vmem_cap * 0.75), max(2 * need_bytes, 32 * 1024 * 1024)))


# ----------------------------------------------------------------------------- wrapper
def laser_filter(x: jnp.ndarray, kernel_size: int, variance: float = 1.0) -> jnp.ndarray:
    """Forward pass of LaserFilter.  x: (N, 1, H, W) -> (N, 1, H, W)."""
    N, C, H, W = x.shape
    assert C == 1, "LaserFilter's Conv2d has in_channels = out_channels = 1"
    K = int(kernel_size)
    lo = (K - 1) // 2
    taps = gaussian_taps(K, variance)

    x3 = x[:, 0]                                     # (N, H, W): W -> lanes, H -> sublanes
    # Lane-dense last dim: pad W up to a multiple of 128 only when not already dense.
    Wk = W if W % 128 == 0 else ((W + 127) // 128) * 128
    if Wk != W:
        x3 = jnp.pad(x3, ((0, 0), (0, 0), (0, Wk - W)))

    t_w = jnp.asarray(_band_matrix(Wk, taps, lo, transposed=False))   # x @ T_W
    t_h = jnp.asarray(_band_matrix(H, taps, lo, transposed=True))     # T_H @ (.)

    itemsize = jnp.dtype(x.dtype).itemsize
    vmem_cap = _vmem_capacity_bytes()
    b_blk = _choose_batch_block(N, H, Wk, itemsize, vmem_cap)
    need = 2 * 4 * (H * H + Wk * Wk) + b_blk * (2 * 2 * H * Wk * itemsize + 2 * H * Wk * 4)
    vmem_limit = _vmem_limit(need, vmem_cap)

    # TODO(synk): images whose full (H, Wk) plane exceeds the VMEM budget (e.g.
    # ~1500x1500 f32 on v7x) need an extra H-block grid axis with a (K-1)-row halo
    # (manual DMA); not required at these shapes.
    out = pl.pallas_call(
        _laser_filter_kernel,
        out_shape=jax.ShapeDtypeStruct((N, H, Wk), x.dtype),
        grid=(pl.cdiv(N, b_blk),),                       # ragged last block is masked
        in_specs=[
            pl.BlockSpec((b_blk, H, Wk), lambda b: (b, 0, 0)),
            pl.BlockSpec((H, H), lambda b: (0, 0)),      # constant block idx -> fetched once
            pl.BlockSpec((Wk, Wk), lambda b: (0, 0)),
        ],
        out_specs=pl.BlockSpec((b_blk, H, Wk), lambda b: (b, 0, 0)),
        compiler_params=pltpu.CompilerParams(
            dimension_semantics=("parallel",),           # megacore-shardable batch axis
            vmem_limit_bytes=vmem_limit,
        ),
    )(x3, t_h, t_w)

    if Wk != W:
        out = out[:, :, :W]
    return out[:, None, :, :]                            # back to NCHW


# ----------------------------------------------------------------------------- reference
def laser_filter_reference(x: jnp.ndarray, kernel_size: int, variance: float = 1.0):
    """Plain-JAX reference: F.conv2d semantics (cross-correlation, 'same', zero pad)."""
    K = int(kernel_size)
    g = jnp.asarray(gaussian_taps(K, variance), jnp.float32)
    w = jnp.outer(g, g)[None, None]                      # (1,1,K,K) OIHW
    lo = (K - 1) // 2
    hi = K - 1 - lo
    y = lax.conv_general_dilated(
        x.astype(jnp.float32), w, window_strides=(1, 1),
        padding=[(lo, hi), (lo, hi)],
        dimension_numbers=("NCHW", "OIHW", "NCHW"),
        precision=lax.Precision.HIGHEST)
    return y.astype(x.dtype)


if __name__ == "__main__":
    kernel_size = 5

    # Case 1: small square image, W not lane-dense (exercises the lane-pad path).
    x1 = jax.random.normal(jax.random.PRNGKey(0), (2, 1, 16, 16), dtype=jnp.float32)
    y1 = jax.block_until_ready(laser_filter(x1, kernel_size))
    r1 = laser_filter_reference(x1, kernel_size)
    assert y1.shape == x1.shape
    assert jnp.allclose(y1, r1, rtol=1e-4, atol=1e-4), "mismatch vs reference conv (case 1)"

    # Case 2: lane-dense W, odd batch (exercises the ragged last grid block).
    x2 = jax.random.normal(jax.random.PRNGKey(0), (3, 1, 24, 128), dtype=jnp.float32)
    y2 = jax.block_until_ready(laser_filter(x2, kernel_size))
    r2 = laser_filter_reference(x2, kernel_size)
    assert y2.shape == x2.shape
    assert jnp.allclose(y2, r2, rtol=1e-4, atol=1e-4), "mismatch vs reference conv (case 2)"

    print("KERNEL_OK")
</pallas_src>

<mosaic_0001>
module attributes {stable_mosaic.version = 11 : i64} {
  func.func @_laser_filter_kernel(%arg0: i32, %arg1: memref<1x16x128xf32, #tpu.memory_space<vmem>>, %arg2: memref<16x16xf32, #tpu.memory_space<vmem>>, %arg3: memref<128x128xf32, #tpu.memory_space<vmem>>, %arg4: memref<1x16x128xf32, #tpu.memory_space<vmem>>) attributes {dimension_semantics = [#tpu.dimension_semantics<parallel>], iteration_bounds = array<i64: 2>, scalar_prefetch = 0 : i64, scratch_operands = 0 : i64, tpu.core_type = #tpu.core_type<tc>, window_params = [{transform_indices = @transform_0, window_bounds = array<i64: 1, 16, 128>}, {pipeline_mode = #tpu.pipeline_mode<synchronous>, transform_indices = @transform_1, window_bounds = array<i64: 16, 16>}, {pipeline_mode = #tpu.pipeline_mode<synchronous>, transform_indices = @transform_2, window_bounds = array<i64: 128, 128>}, {transform_indices = @transform_3, window_bounds = array<i64: 1, 16, 128>}]} {
    %c0 = arith.constant 0 : index
    %c0_0 = arith.constant 0 : index
    %0 = vector.load %arg3[%c0, %c0_0] : memref<128x128xf32, #tpu.memory_space<vmem>>, vector<128x128xf32>
    %c0_1 = arith.constant 0 : index
    %c0_2 = arith.constant 0 : index
    %1 = vector.load %arg2[%c0_1, %c0_2] : memref<16x16xf32, #tpu.memory_space<vmem>>, vector<16x16xf32>
    %c0_3 = arith.constant 0 : index
    %c0_4 = arith.constant 0 : index
    %c0_5 = arith.constant 0 : index
    %2 = vector.load %arg1[%c0_3, %c0_4, %c0_5] : memref<1x16x128xf32, #tpu.memory_space<vmem>>, vector<1x16x128xf32>
    %3 = vector.shape_cast %2 : vector<1x16x128xf32> to vector<16x128xf32>
    %cst = arith.constant dense<0.000000e+00> : vector<16x128xf32>
    %4 = tpu.matmul %3, %0, %cst {dimension_numbers = #tpu.dot_dimension_numbers<[1], [0], [0], [1], [0, 0, 1, 1], [], []>} : vector<16x128xf32>, vector<128x128xf32>, vector<16x128xf32> -> vector<16x128xf32>
    %cst_6 = arith.constant dense<0.000000e+00> : vector<16x128xf32>
    %5 = tpu.matmul %1, %4, %cst_6 {dimension_numbers = #tpu.dot_dimension_numbers<[1], [0], [0], [1], [0, 0, 1, 1], [], []>} : vector<16x16xf32>, vector<16x128xf32>, vector<16x128xf32> -> vector<16x128xf32>
    %c0_7 = arith.constant 0 : index
    %c0_8 = arith.constant 0 : index
    %c0_9 = arith.constant 0 : index
    %6 = vector.load %arg4[%c0_7, %c0_8, %c0_9] : memref<1x16x128xf32, #tpu.memory_space<vmem>>, vector<1x16x128xf32>
    %7 = vector.shape_cast %6 : vector<1x16x128xf32> to vector<16x128xf32>
    %8 = vector.shape_cast %5 : vector<16x128xf32> to vector<1x16x128xf32>
    tpu.vector_store %arg4[%c0_7, %c0_8, %c0_9], %8 {strides = array<i32>} : memref<1x16x128xf32, #tpu.memory_space<vmem>>, vector<1x16x128xf32>,
    return
  }
  func.func @transform_0(%arg0: i32) -> (i32, i32, i32) {
    %c0_i32 = arith.constant 0 : i32
    %c0_i32_0 = arith.constant 0 : i32
    %c0_i32_1 = arith.constant 0 : i32
    return %arg0, %c0_i32, %c0_i32_0 : i32, i32, i32
  }
  func.func @transform_1(%arg0: i32) -> (i32, i32) {
    %c0_i32 = arith.constant 0 : i32
    %c0_i32_0 = arith.constant 0 : i32
    %c0_i32_1 = arith.constant 0 : i32
    return %c0_i32, %c0_i32_0 : i32, i32
  }
  func.func @transform_2(%arg0: i32) -> (i32, i32) {
    %c0_i32 = arith.constant 0 : i32
    %c0_i32_0 = arith.constant 0 : i32
    %c0_i32_1 = arith.constant 0 : i32
    return %c0_i32, %c0_i32_0 : i32, i32
  }
  func.func @transform_3(%arg0: i32) -> (i32, i32, i32) {
    %c0_i32 = arith.constant 0 : i32
    %c0_i32_0 = arith.constant 0 : i32
    %c0_i32_1 = arith.constant 0 : i32
    return %arg0, %c0_i32, %c0_i32_0 : i32, i32, i32
  }
}

</mosaic_0001>

<llo_original>
// kernel: tpu_custom_call.1
$region0: #{tpu_custom_call.1}
  #allocation0 [shape = 'u32[]', space=smem, size = 0x4, offset = 0x4, fixed_abs, tag = 'smem constant byte address 0x4 - core index']
  #allocation1 [shape = 'u32[144,128]{1,0:T(1,128)}', space=vmem, size = 0x12000, scoped, tag = 'internal scratch']
  %s0 = inlined_call_operand.hbm [shape: f32[2,16,128], index: 0, kind: input, shape index: {}]
  %s1 = inlined_call_operand.hbm [shape: f32[16,16], index: 1, kind: input, shape index: {}]
  %s2 = inlined_call_operand.hbm [shape: f32[128,128], index: 2, kind: input, shape index: {}]
  %s3 = inlined_call_operand.hbm [shape: f32[2,16,128], index: 3, kind: output, shape index: {}]
  %s4 = sld [smem:[#allocation0]]
  $region57: #{tpu_custom_call.1} parent=0
    _
  %s6 = ssub.s32 1, %s4
  %s7 = scalar_select 0, %s6, %s4
  $region1: #{tpu_custom_call.1} parent=0
    #allocation2 [shape = 'u8[16384]{0}', space=vmem, size = 0x4000, scoped, tag = 'input window, operand 0']
    #allocation3 [shape = 's32[2]{0}', space=sflag, size = 0x8, scoped, tag = 'scoped memory for tpu_custom_call.1']
    #allocation4 [shape = 's32[2]{0}', space=sflag, size = 0x8, scoped, tag = 'scoped memory for tpu_custom_call.1']
    #allocation5 [shape = 'u8[8192]{0}', space=vmem, size = 0x2000, scoped, tag = 'input window, operand 1, single buffered']
    #allocation6 [shape = 's32[1]{0}', space=sflag, size = 0x4, scoped, tag = 'scoped memory for tpu_custom_call.1']
    #allocation7 [shape = 'u8[65536]{0}', space=vmem, size = 0x10000, scoped, tag = 'input window, operand 2, single buffered']
    #allocation8 [shape = 'u8[16384]{0}', space=vmem, size = 0x4000, scoped, tag = 'output window, operand 0']
    %8 = vsyncpa [#allocation3], 0
    %s9 = scalar_lea.sflag [#allocation3], 1
    %10 = vsyncpa %s9, 0
    %11 = vsyncpa [#allocation6], 0
    %12 = vsyncpa [#allocation4], 0
    %s13 = scalar_lea.sflag [#allocation4], 1
    %14 = vsyncpa %s13, 0
    loop: start=0, step=1, limit=4
    $region2: #{tpu_custom_call.1} parent=1 // loop_pre_header
      _
    $region3: #{tpu_custom_call.1} parent=1 // loop_header
      %s16 = sphi 0, %s20
      %p17 = scmp.ge.s32.totalorder %s16, 4
      %s26 = sphi 0, %s28
      %s29 = sphi 0, %s26
      %s30 = sphi 0, %s29
      %s46 = sphi 0, %s30
      %s50 = sphi 0, %s50
      %s52 = sphi 0, %s50
      %s53 = sphi 0, %s52
      %s67 = sphi 0, %s53
      %s71 = sphi 0, %s71
      %s73 = sphi 0, %s71
      %s74 = sphi 0, %s73
      %s88 = sphi 0, %s74
      %s94 = sphi 0, %s96
      %s97 = sphi 0, %s94
      %s98 = sphi 0, %s97
      %s114 = sphi 0, %s98
    $region4: #{tpu_custom_call.1} parent=1 // loop_header_branch
      %19 = sbr.rel (%p17) target = $region8
    $region5: #{tpu_custom_call.1} parent=1 // loop_body
      %s21 = ssub.s32 %s16, 1
      %s22 = ssub.s32 %s16, 2
      %s23 = sadd.s32 %s16, 1
      %s24 = ssub.s32 %s16, %s23
      %p25 = scmp.eq.s32.totalorder %s24, 0
      %s27 = sadd.s32 %s26, 1
      %s28 = scalar_select %p25, %s26, %s27
      %p31 = pneg %p25
      %p32 = scmp.eq.s32.totalorder %s16, 1
      %p33 = por %p31, %p32
      %p34 = scmp.ne.s32.totalorder %s26, %s29
      %p35 = scmp.eq.s32.totalorder %s16, 0
      %p36 = por %p34, %p35
      %p37 = scmp.ne.s32.totalorder %s26, %s29
      %p38 = scmp.eq.s32.totalorder %s21, 1
      %p39 = por %p37, %p38
      %p40 = scmp.ne.s32.totalorder %s29, %s30
      %p41 = scmp.eq.s32.totalorder %s21, 0
      %p42 = por %p40, %p41
      %p43 = scmp.ne.s32.totalorder %s29, %s30
      %p44 = scmp.eq.s32.totalorder %s22, 1
      %p45 = por %p43, %p44
      %p47 = scmp.ne.s32.totalorder %s30, %s46
      %p48 = scmp.eq.s32.totalorder %s22, 0
      %p49 = por %p47, %p48
      %s51 = sadd.s32 %s50, 1
      %p54 = scmp.eq.s32.totalorder %s16, 1
      %p55 = scmp.ne.s32.totalorder %s50, %s52
      %p56 = scmp.eq.s32.totalorder %s16, 0
      %p57 = por %p55, %p56
      %p58 = scmp.ne.s32.totalorder %s50, %s52
      %p59 = scmp.eq.s32.totalorder %s21, 1
      %p60 = por %p58, %p59
      %p61 = scmp.ne.s32.totalorder %s52, %s53
      %p62 = scmp.eq.s32.totalorder %s21, 0
      %p63 = por %p61, %p62
      %p64 = scmp.ne.s32.totalorder %s52, %s53
      %p65 = scmp.eq.s32.totalorder %s22, 1
      %p66 = por %p64, %p65
      %p68 = scmp.ne.s32.totalorder %s53, %s67
      %p69 = scmp.eq.s32.totalorder %s22, 0
      %p70 = por %p68, %p69
      %s72 = sadd.s32 %s71, 1
      %p75 = scmp.eq.s32.totalorder %s16, 1
      %p76 = scmp.ne.s32.totalorder %s71, %s73
      %p77 = scmp.eq.s32.totalorder %s16, 0
      %p78 = por %p76, %p77
      %p79 = scmp.ne.s32.totalorder %s71, %s73
      %p80 = scmp.eq.s32.totalorder %s21, 1
      %p81 = por %p79, %p80
      %p82 = scmp.ne.s32.totalorder %s73, %s74
      %p83 = scmp.eq.s32.totalorder %s21, 0
      %p84 = por %p82, %p83
      %p85 = scmp.ne.s32.totalorder %s73, %s74
      %p86 = scmp.eq.s32.totalorder %s22, 1
      %p87 = por %p85, %p86
      %p89 = scmp.ne.s32.totalorder %s74, %s88
      %p90 = scmp.eq.s32.totalorder %s22, 0
      %p91 = por %p89, %p90
      %s92 = ssub.s32 %s16, %s23
      %p93 = scmp.eq.s32.totalorder %s92, 0
      %s95 = sadd.s32 %s94, 1
      %s96 = scalar_select %p93, %s94, %s95
      %p99 = pneg %p93
      %p100 = scmp.eq.s32.totalorder %s16, 1
      %p101 = por %p99, %p100
      %p102 = scmp.ne.s32.totalorder %s94, %s97
      %p103 = scmp.eq.s32.totalorder %s16, 0
      %p104 = por %p102, %p103
      %p105 = scmp.ne.s32.totalorder %s94, %s97
      %p106 = scmp.eq.s32.totalorder %s21, 1
      %p107 = por %p105, %p106
      %p108 = scmp.ne.s32.totalorder %s97, %s98
      %p109 = scmp.eq.s32.totalorder %s21, 0
      %p110 = por %p108, %p109
      %p111 = scmp.ne.s32.totalorder %s97, %s98
      %p112 = scmp.eq.s32.totalorder %s22, 1
      %p113 = por %p111, %p112
      %p115 = scmp.ne.s32.totalorder %s98, %s114
      %p116 = scmp.eq.s32.totalorder %s22, 0
      %p117 = por %p115, %p116
      %p118 = scmp.le.s32.totalorder 1, %s16
      %p119 = scmp.lt.s32.totalorder %s16, 3
      %p120 = pnand %p118, %p119
      %p121 = pneg %p120
      // Predicated region
      $region9: #{tpu_custom_call.1} parent=5 // pred_check
        _
      $region10: #{tpu_custom_call.1} parent=5 // pred_check_branch
        %123 = sbr.rel (%p120) target = $region12
      $region11: #{tpu_custom_call.1} parent=5 // pred_region
        %s124 = ssub.s32 %s16, 1
        // Predicated region
        $region13: #{tpu_custom_call.1} parent=11 // pred_check
          %p125 = pneg %p63
        $region14: #{tpu_custom_call.1} parent=11 // pred_check_branch
          %127 = sbr.rel (%p125) target = $region16
        $region15: #{tpu_custom_call.1} parent=11 // pred_region
          %s129 = ssub.s32 256, 256
          %130 = vsyncadd [#allocation6], %s129
          %s131 = sshll.u32 [#allocation5], 4
          %s132 = int_to_ptr.vmem [resolvable:$true] %s131
          %137 = dma.hbm_to_vmem [thread:$0]  %s1, 256, %s132, [#allocation6], 128, 128, 8
        $region16: #{tpu_custom_call.1} parent=11 // pred_fallthru
          _
        // Predicated region
        $region17: #{tpu_custom_call.1} parent=11 // pred_check
          %p138 = pneg %p84
        $region18: #{tpu_custom_call.1} parent=11 // pred_check_branch
          %140 = sbr.rel (%p138) target = $region20
        $region19: #{tpu_custom_call.1} parent=11 // pred_region
          %s142 = ssub.s32 2048, 2048
          %143 = vsyncadd [#allocation6], %s142
          %s144 = sshll.u32 [#allocation7], 4
          %s145 = int_to_ptr.vmem [resolvable:$true] %s144
          %150 = dma.hbm_to_vmem [thread:$0]  %s2, 2048, %s145, [#allocation6], 128, 128, 8
        $region20: #{tpu_custom_call.1} parent=11 // pred_fallthru
          _
      $region12: #{tpu_custom_call.1} parent=5 // pred_fallthru
        _
      %p151 = scmp.lt.s32.totalorder %s16, 2
      // Predicated region
      $region21: #{tpu_custom_call.1} parent=5 // pred_check
        %p152 = pneg %p151
      $region22: #{tpu_custom_call.1} parent=5 // pred_check_branch
        %154 = sbr.rel (%p152) target = $region24
      $region23: #{tpu_custom_call.1} parent=5 // pred_region
        // Predicated region
        $region25: #{tpu_custom_call.1} parent=23 // pred_check
          %p155 = pneg %p36
        $region26: #{tpu_custom_call.1} parent=23 // pred_check_branch
          %157 = sbr.rel (%p155) target = $region28
        $region27: #{tpu_custom_call.1} parent=23 // pred_region
          %s158 = sand.u32 %s26, 1
          %s159 = scalar_lea.sflag [#allocation3], %s158
          %s160 = sand.u32 %s26, 1
          %s161 = smul.addr %s160, 16
          %s162 = scalar_lea.vmem [#allocation2], %s161
          %s164 = ssub.s32 256, 256
          %165 = vsyncadd %s159, %s164
          %s166 = smul.addr %s16, 2
          %s167 = smul.addr %s166, 128
          %s168 = scalar_lea.hbm %s0, %s167
          %s169 = sshll.u32 %s162, 4
          %s170 = int_to_ptr.vmem [resolvable:$true] %s169
          %175 = dma.hbm_to_vmem [thread:$0]  %s168, 256, %s170, %s159, 128, 128, 8
        $region28: #{tpu_custom_call.1} parent=23 // pred_fallthru
          _
      $region24: #{tpu_custom_call.1} parent=5 // pred_fallthru
        _
      %p176 = scmp.le.s32.totalorder 1, %s16
      %p177 = scmp.lt.s32.totalorder %s16, 3
      %p178 = pnand %p176, %p177
      %p179 = pneg %p178
      // Predicated region
      $region29: #{tpu_custom_call.1} parent=5 // pred_check
        _
      $region30: #{tpu_custom_call.1} parent=5 // pred_check_branch
        %181 = sbr.rel (%p178) target = $region32
      $region31: #{tpu_custom_call.1} parent=5 // pred_region
        %s182 = ssub.s32 %s16, 1
        %s183 = sand.u32 %s29, 1
        %s184 = scalar_lea.sflag [#allocation3], %s183
        %s185 = sand.u32 %s29, 1
        %s186 = smul.addr %s185, 16
        %s187 = scalar_lea.vmem [#allocation2], %s186
        // Predicated region
        $region33: #{tpu_custom_call.1} parent=31 // pred_check
          %p188 = pneg %p42
        $region34: #{tpu_custom_call.1} parent=31 // pred_check_branch
          %190 = sbr.rel (%p188) target = $region36
        $region35: #{tpu_custom_call.1} parent=31 // pred_region
          %191 = dma.done %s184, 256
        $region36: #{tpu_custom_call.1} parent=31 // pred_fallthru
          _
        // Predicated region
        $region37: #{tpu_custom_call.1} parent=31 // pred_check
          %p192 = pneg %p63
        $region38: #{tpu_custom_call.1} parent=31 // pred_check_branch
          %194 = sbr.rel (%p192) target = $region40
        $region39: #{tpu_custom_call.1} parent=31 // pred_region
          %195 = dma.done [#allocation6], 256
        $region40: #{tpu_custom_call.1} parent=31 // pred_fallthru
          _
        // Predicated region
        $region41: #{tpu_custom_call.1} parent=31 // pred_check
          %p196 = pneg %p84
        $region42: #{tpu_custom_call.1} parent=31 // pred_check_branch
          %198 = sbr.rel (%p196) target = $region44
        $region43: #{tpu_custom_call.1} parent=31 // pred_region
          %199 = dma.done [#allocation6], 2048
        $region44: #{tpu_custom_call.1} parent=31 // pred_fallthru
          _
        %s200 = sand.u32 %s29, 1
        %s201 = scalar_lea.sflag [#allocation3], %s200
        %s202 = sand.u32 %s29, 1
        %s203 = smul.addr %s202, 16
        %s204 = scalar_lea.vmem [#allocation2], %s203
        %p205 = pneg %p42
        %p206 = pneg %p39
        %p207 = pneg %p63
        %p208 = pneg %p60
        %p209 = pneg %p84
        %p210 = pneg %p81
        %p211 = pneg %p110
        %p212 = pneg %p107
        %s213 = sand.u32 %s97, 1
        %s214 = scalar_lea.sflag [#allocation4], %s213
        %s215 = sand.u32 %s97, 1
        %s216 = smul.addr %s215, 16
        %s217 = scalar_lea.vmem [#allocation8], %s216
        %v218 = vld [vmem:[#allocation7] sm:$0xff]
        %v219 = vld [vmem:[#allocation7 + $0x8] sm:$0xff]
        %v220 = vld [vmem:[#allocation7 + $0x10] sm:$0xff]
        %v221 = vld [vmem:[#allocation7 + $0x18] sm:$0xff]
        %v222 = vld [vmem:[#allocation7 + $0x20] sm:$0xff]
        %v223 = vld [vmem:[#allocation7 + $0x28] sm:$0xff]
        %v224 = vld [vmem:[#allocation7 + $0x30] sm:$0xff]
        %v225 = vld [vmem:[#allocation7 + $0x38] sm:$0xff]
        %v226 = vld [vmem:[#allocation7 + $0x40] sm:$0xff]
        %v227 = vld [vmem:[#allocation7 + $0x48] sm:$0xff]
        %v228 = vld [vmem:[#allocation7 + $0x50] sm:$0xff]
        %v229 = vld [vmem:[#allocation7 + $0x58] sm:$0xff]
        %v230 = vld [vmem:[#allocation7 + $0x60] sm:$0xff]
        %v231 = vld [vmem:[#allocation7 + $0x68] sm:$0xff]
        %v232 = vld [vmem:[#allocation7 + $0x70] sm:$0xff]
        %v233 = vld [vmem:[#allocation7 + $0x78] sm:$0xff]
        %v234 = vld [vmem:[#allocation5] sm:$0xff]
        %v235 = vld [vmem:[#allocation5 + $0x8] sm:$0xff]
        %v236 = vld [vmem:[%s187] sm:$0xff]
        %v237 = vld [vmem:[%s187 + $0x8] sm:$0xff]
        %238 = vmatprep.subr.mxu0 0.0
        %239 = vmatpush1.msra.mxu0 %v218
        %240 = vmatprep.subr.mxu0 0.0
        %241 = vmatpush1.msra.mxu0 %v219
        %242 = vmatprep.subr.mxu0 0.0
        %243 = vmatpush1.msra.mxu0 %v220
        %244 = vmatprep.subr.mxu0 0.0
        %245 = vmatpush1.msra.mxu0 %v221
        %246 = vmatprep.subr.mxu0 0.0
        %247 = vmatpush1.msra.mxu0 %v222
        %248 = vmatprep.subr.mxu0 0.0
        %249 = vmatpush1.msra.mxu0 %v223
        %250 = vmatprep.subr.mxu0 0.0
        %251 = vmatpush1.msra.mxu0 %v224
        %252 = vmatprep.subr.mxu0 0.0
        %253 = vmatpush1.msra.mxu0 %v225
        %254 = vmatprep.subr.mxu0 0.0
        %255 = vmatpush1.msra.mxu0 %v226
        %256 = vmatprep.subr.mxu0 0.0
        %257 = vmatpush1.msra.mxu0 %v227
        %258 = vmatprep.subr.mxu0 0.0
        %259 = vmatpush1.msra.mxu0 %v228
        %260 = vmatprep.subr.mxu0 0.0
        %261 = vmatpush1.msra.mxu0 %v229
        %262 = vmatprep.subr.mxu0 0.0
        %263 = vmatpush1.msra.mxu0 %v230
        %264 = vmatprep.subr.mxu0 0.0
        %265 = vmatpush1.msra.mxu0 %v231
        %266 = vmatprep.subr.mxu0 0.0
        %267 = vmatpush1.msra.mxu0 %v232
        %268 = vmatprep.subr.mxu0 0.0
        %269 = vmatpush1.msra.mxu0 %v233
        %270 = vmatprep.subr.mxu0 0.0
        %271 = vmatpush1.msra.mxu0 0.0
        %272 = vmatprep.subr.mxu0 0.0
        %273 = vmatpush1.msra.mxu0 0.0
        %274 = vmatprep.subr.mxu0 0.0
        %275 = vmatpush1.msra.mxu0 0.0
        %276 = vmatprep.subr.mxu0 0.0
        %277 = vmatpush1.msra.mxu0 0.0
        %278 = vmatprep.subr.mxu0 0.0
        %279 = vmatpush1.msra.mxu0 0.0
        %280 = vmatprep.subr.mxu0 0.0
        %281 = vmatpush1.msra.mxu0 0.0
        %282 = vmatprep.subr.mxu0 0.0
        %283 = vmatpush1.msra.mxu0 0.0
        %284 = vmatprep.subr.mxu0 0.0
        %285 = vmatpush1.msra.mxu0 0.0
        %286 = vmatprep.subr.mxu0 0.0
        %287 = vmatpush1.msra.mxu0 0.0
        %288 = vmatprep.subr.mxu0 0.0
        %289 = vmatpush1.msra.mxu0 0.0
        %290 = vmatprep.subr.mxu0 0.0
        %291 = vmatpush1.msra.mxu0 0.0
        %292 = vmatprep.subr.mxu0 0.0
        %293 = vmatpush1.msra.mxu0 0.0
        %294 = vmatprep.subr.mxu0 0.0
        %295 = vmatpush1.msra.mxu0 0.0
        %296 = vmatprep.subr.mxu0 0.0
        %297 = vmatpush1.msra.mxu0 0.0
        %298 = vmatprep.subr.mxu0 0.0
        %299 = vmatpush1.msra.mxu0 0.0
        %300 = vmatprep.subr.mxu0 0.0
        %301 = vmatpush1.msra.mxu0 0.0
        %302 = vmatprep.mubr.f32.mxu0 0.0
        %303 = vmatmul.mubr.f32.gmra.mrb[0].mxu0 %v236
        %v304 = vpop.f32.mrb[0].mxu0
        %v305 = vadd.f32 0.0, %v304
        %v306 = vpop.f32.mrb[0].mxu0
        %307 = vmatprep.mubr.f32.mxu0 0.0
        %308 = vmatmul.mubr.f32.gmra.mrb[0].mxu0 %v237
        %v309 = vpop.f32.mrb[0].mxu0
        %v310 = vadd.f32 0.0, %v309
        %v311 = vpop.f32.mrb[0].mxu0
        %312 = vdwg.mxu0
        %vm313 = vcmask 130048
        %v315 = vsel %vm313, %v234, 0
        %v318 = vsel %vm313, %v235, 0
        %320 = vmatprep.subr.mxu0 0.0
        %321 = vmatpush1.msra.mxu0 %v305
        %322 = vmatprep.subr.mxu0 0.0
        %323 = vmatpush1.msra.mxu0 %v310
        %324 = vmatprep.subr.mxu0 0.0
        %325 = vmatpush1.msra.mxu0 0.0
        %326 = vmatprep.subr.mxu0 0.0
        %327 = vmatpush1.msra.mxu0 0.0
        %328 = vmatprep.subr.mxu0 0.0
        %329 = vmatpush1.msra.mxu0 0.0
        %330 = vmatprep.subr.mxu0 0.0
        %331 = vmatpush1.msra.mxu0 0.0
        %332 = vmatprep.subr.mxu0 0.0
        %333 = vmatpush1.msra.mxu0 0.0
        %334 = vmatprep.subr.mxu0 0.0
        %335 = vmatpush1.msra.mxu0 0.0
        %336 = vmatprep.subr.mxu0 0.0
        %337 = vmatpush1.msra.mxu0 0.0
        %338 = vmatprep.subr.mxu0 0.0
        %339 = vmatpush1.msra.mxu0 0.0
        %340 = vmatprep.subr.mxu0 0.0
        %341 = vmatpush1.msra.mxu0 0.0
        %342 = vmatprep.subr.mxu0 0.0
        %343 = vmatpush1.msra.mxu0 0.0
        %344 = vmatprep.subr.mxu0 0.0
        %345 = vmatpush1.msra.mxu0 0.0
        %346 = vmatprep.subr.mxu0 0.0
        %347 = vmatpush1.msra.mxu0 0.0
        %348 = vmatprep.subr.mxu0 0.0
        %349 = vmatpush1.msra.mxu0 0.0
        %350 = vmatprep.subr.mxu0 0.0
        %351 = vmatpush1.msra.mxu0 0.0
        %352 = vmatprep.subr.mxu0 0.0
        %353 = vmatpush1.msra.mxu0 0.0
        %354 = vmatprep.subr.mxu0 0.0
        %355 = vmatpush1.msra.mxu0 0.0
        %356 = vmatprep.subr.mxu0 0.0
        %357 = vmatpush1.msra.mxu0 0.0
        %358 = vmatprep.subr.mxu0 0.0
        %359 = vmatpush1.msra.mxu0 0.0
        %360 = vmatprep.subr.mxu0 0.0
        %361 = vmatpush1.msra.mxu0 0.0
        %362 = vmatprep.subr.mxu0 0.0
        %363 = vmatpush1.msra.mxu0 0.0
        %364 = vmatprep.subr.mxu0 0.0
        %365 = vmatpush1.msra.mxu0 0.0
        %366 = vmatprep.subr.mxu0 0.0
        %367 = vmatpush1.msra.mxu0 0.0
        %368 = vmatprep.subr.mxu0 0.0
        %369 = vmatpush1.msra.mxu0 0.0
        %370 = vmatprep.subr.mxu0 0.0
        %371 = vmatpush1.msra.mxu0 0.0
        %372 = vmatprep.subr.mxu0 0.0
        %373 = vmatpush1.msra.mxu0 0.0
        %374 = vmatprep.subr.mxu0 0.0
        %375 = vmatpush1.msra.mxu0 0.0
        %376 = vmatprep.subr.mxu0 0.0
        %377 = vmatpush1.msra.mxu0 0.0
        %378 = vmatprep.subr.mxu0 0.0
        %379 = vmatpush1.msra.mxu0 0.0
        %380 = vmatprep.subr.mxu0 0.0
        %381 = vmatpush1.msra.mxu0 0.0
        %382 = vmatprep.subr.mxu0 0.0
        %383 = vmatpush1.msra.mxu0 0.0
        %384 = vmatprep.mubr.f32.mxu0 0.0
        %385 = vmatmul.mubr.f32.gmra.mrb[0].mxu0 %v315
        %v386 = vpop.f32.mrb[0].mxu0
        %v387 = vadd.f32 0.0, %v386
        %v388 = vpop.f32.mrb[0].mxu0
        %389 = vmatprep.mubr.f32.mxu0 0.0
        %390 = vmatmul.mubr.f32.gmra.mrb[0].mxu0 %v318
        %v391 = vpop.f32.mrb[0].mxu0
        %v392 = vadd.f32 0.0, %v391
        %v393 = vpop.f32.mrb[0].mxu0
        %394 = vdwg.mxu0
        %395 = vst [vmem:[%s217] sm:$0xff] %v387
        %396 = vst [vmem:[%s217 + $0x8] sm:$0xff] %v392
        %s397 = sand.u32 %s97, 1
        %s398 = scalar_lea.sflag [#allocation4], %s397
        %s399 = sand.u32 %s97, 1
        %s400 = smul.addr %s399, 16
        %s401 = scalar_lea.vmem [#allocation8], %s400
        // Predicated region
        $region45: #{tpu_custom_call.1} parent=31 // pred_check
          %p402 = pneg %p107
        $region46: #{tpu_custom_call.1} parent=31 // pred_check_branch
          %404 = sbr.rel (%p402) target = $region48
        $region47: #{tpu_custom_call.1} parent=31 // pred_region
          %s406 = ssub.s32 256, 256
          %407 = vsyncadd %s398, %s406
          %s408 = smul.addr %s21, 2
          %s409 = smul.addr %s408, 128
          %s410 = scalar_lea.hbm %s3, %s409
          %s411 = sshll.u32 %s401, 4
          %s412 = int_to_ptr.vmem [resolvable:$true] %s411
          %417 = dma.vmem_to_hbm [thread:$0]  %s412, 256, %s410, %s398, 128, 128, 8
        $region48: #{tpu_custom_call.1} parent=31 // pred_fallthru
          _
      $region32: #{tpu_custom_call.1} parent=5 // pred_fallthru
        _
      %p418 = scmp.le.s32.totalorder 2, %s16
      // Predicated region
      $region49: #{tpu_custom_call.1} parent=5 // pred_check
        %p419 = pneg %p418
      $region50: #{tpu_custom_call.1} parent=5 // pred_check_branch
        %421 = sbr.rel (%p419) target = $region52
      $region51: #{tpu_custom_call.1} parent=5 // pred_region
        %s422 = ssub.s32 %s16, 2
        // Predicated region
        $region53: #{tpu_custom_call.1} parent=51 // pred_check
          %p423 = pneg %p113
        $region54: #{tpu_custom_call.1} parent=51 // pred_check_branch
          %425 = sbr.rel (%p423) target = $region56
        $region55: #{tpu_custom_call.1} parent=51 // pred_region
          %s426 = sand.u32 %s98, 1
          %s427 = scalar_lea.sflag [#allocation4], %s426
          %s428 = sand.u32 %s98, 1
          %s429 = smul.addr %s428, 16
          %s430 = scalar_lea.vmem [#allocation8], %s429
          %431 = dma.done %s427, 256
        $region56: #{tpu_custom_call.1} parent=51 // pred_fallthru
          _
      $region52: #{tpu_custom_call.1} parent=5 // pred_fallthru
        _
    $region6: #{tpu_custom_call.1} parent=1 // loop_footer
      %s20 = sadd.s32 1, %s16
    $region7: #{tpu_custom_call.1} parent=1 // loop_footer_branch
      %15 = sbr.rel target = $region3
    $region8: #{tpu_custom_call.1} parent=1 // loop_exit
      _
    %432 = vsyncpa [#allocation3], 1
    %s433 = scalar_lea.sflag [#allocation3], 1
    %434 = vsyncpa %s433, 1
    %435 = vsyncpa [#allocation6], 1
    %436 = vsyncpa [#allocation4], 1
    %s437 = scalar_lea.sflag [#allocation4], 1
    %438 = vsyncpa %s437, 1

</llo_original>
